<compile_context>
chip_gen: v7x
topology: tpu7x:2x2x1
jax: 0.10.0
libtpu: 0.0.40
codegen_flags: <defaults>
</compile_context>

<pallas_src>
import numpy as np
import jax
import jax.numpy as jnp
from jax.experimental import pallas as pl
from jax.experimental.pallas import tpu as pltpu


def _round_up(a, b):
    return (a + b - 1) // b * b


def _vmem_budget_bytes():
    """(pipeline-buffer budget, vmem_limit_bytes) chosen per TPU generation."""
    try:
        cap = int(pltpu.get_tpu_info().vmem_capacity_bytes)
    except Exception:
        cap = 64 * 1024 * 1024  # conservative fallback: v7x-class (64 MiB / TC)
    if cap <= 64 * 1024 * 1024:
        return 24 * 1024 * 1024, 32 * 1024 * 1024      # v7x
    return 48 * 1024 * 1024, 64 * 1024 * 1024          # v5e / v6e (128 MiB physical)


def custom_ref_pad2d(x, padding, *, block_planes=None):
    """Equivalent of F.pad(x, padding, mode='reflect') for x of shape (N, C, H, W).

    padding = (left, right, top, bottom) -- PyTorch F.pad convention.
    """
    pad_l, pad_r, pad_t, pad_b = (int(p) for p in padding)
    N, C, H, W = x.shape
    assert 0 <= pad_l < W and 0 <= pad_r < W and 0 <= pad_t < H and 0 <= pad_b < H, \
        "reflect padding must be smaller than the corresponding input dim"
    H_out = H + pad_t + pad_b
    W_out = W + pad_l + pad_r
    NC = N * C

    itemsize = jnp.dtype(x.dtype).itemsize
    sub = max(8, 32 // itemsize)          # sublane multiple: f32 -> 8, bf16 -> 16, int8 -> 32
    # *Padded* VMEM footprint per plane (lanes rounded to 128, sublanes to `sub`).
    padded_in = _round_up(H, sub) * _round_up(W, 128) * itemsize
    padded_out = _round_up(H_out, sub) * _round_up(W_out, 128) * itemsize
    per_plane_padded = padded_in + padded_out

    budget, vmem_limit = _vmem_budget_bytes()

    if block_planes is None:
        bp = max(1, budget // (2 * per_plane_padded))   # x2: double-buffered in + out
        bp = min(bp, NC, 1024)
        if NC >= 8:
            # Aim for >= ~8 grid steps (pipeline overlap + megacore sharding) while
            # keeping each input DMA >= ~1 MiB of contiguous HBM when NC allows.
            dma_floor = max(1, (1 << 20) // max(1, H * W * itemsize))
            bp = min(bp, max(NC // 8, min(dma_floor, NC // 2)))
        elif NC >= 2:
            bp = min(bp, pl.cdiv(NC, 2))
        block_planes = max(1, int(bp))
    Bp = int(block_planes)
    grid = (pl.cdiv(NC, Bp),)

    def kernel(x_ref, o_ref):
        xv = x_ref[...]                                            # (Bp, H, W)

        # Interior: single store (all static slices).
        o_ref[:, pad_t:pad_t + H, pad_l:pad_l + W] = xv

        # Left / right column reflections (pads are small -> few 1-wide stores).
        for j in range(pad_l):                                     # out col j      <- in col pad_l - j
            o_ref[:, pad_t:pad_t + H, j:j + 1] = xv[:, :, pad_l - j:pad_l - j + 1]
        for k in range(pad_r):                                     # out col pl+W+k <- in col W - 2 - k
            o_ref[:, pad_t:pad_t + H, pad_l + W + k:pad_l + W + k + 1] = \
                xv[:, :, W - 2 - k:W - 1 - k]

        # Top / bottom row reflections: copy full-width rows already written above.
        for i in range(pad_t):                                     # out row i       <- out row 2*pad_t - i
            src = 2 * pad_t - i
            o_ref[:, i:i + 1, :] = o_ref[:, src:src + 1, :]
        for k in range(pad_b):                                     # out row pt+H+k  <- out row pt+H-2-k
            dst = pad_t + H + k
            src = pad_t + H - 2 - k
            o_ref[:, dst:dst + 1, :] = o_ref[:, src:src + 1, :]

    x_flat = x.reshape(NC, H, W)

    out_flat = pl.pallas_call(
        kernel,
        out_shape=jax.ShapeDtypeStruct((NC, H_out, W_out), x.dtype),
        grid_spec=pltpu.PrefetchScalarGridSpec(
            num_scalar_prefetch=0,
            grid=grid,
            in_specs=[pl.BlockSpec((Bp, H, W), lambda b: (b, 0, 0))],
            out_specs=pl.BlockSpec((Bp, H_out, W_out), lambda b: (b, 0, 0)),
        ),
        compiler_params=pltpu.CompilerParams(
            dimension_semantics=("parallel",),
            vmem_limit_bytes=int(vmem_limit),
        ),
    )(x_flat)

    return out_flat.reshape(N, C, H_out, W_out)


if __name__ == "__main__":
    key = jax.random.PRNGKey(0)
    x = jax.random.normal(key, (2, 4, 16, 16), dtype=jnp.float32)
    padding = (2, 2, 2, 2)  # (left, right, top, bottom) -- F.pad convention

    out = jax.block_until_ready(custom_ref_pad2d(x, padding))

    # Reference check (jnp.pad 'reflect' matches PyTorch reflect semantics).
    ref = jnp.pad(
        x,
        ((0, 0), (0, 0), (padding[2], padding[3]), (padding[0], padding[1])),
        mode="reflect",
    )
    assert out.shape == ref.shape == (2, 4, 20, 20)
    np.testing.assert_allclose(np.asarray(out), np.asarray(ref), rtol=0, atol=0)
    print("KERNEL_OK")
</pallas_src>

<mosaic_0001>
module attributes {stable_mosaic.version = 11 : i64} {
  func.func @kernel(%arg0: i32, %arg1: memref<4x16x16xf32, #tpu.memory_space<vmem>>, %arg2: memref<4x20x20xf32, #tpu.memory_space<vmem>>) attributes {dimension_semantics = [#tpu.dimension_semantics<parallel>], iteration_bounds = array<i64: 2>, scalar_prefetch = 0 : i64, scratch_operands = 0 : i64, tpu.core_type = #tpu.core_type<tc>, window_params = [{transform_indices = @transform_0, window_bounds = array<i64: 4, 16, 16>}, {transform_indices = @transform_1, window_bounds = array<i64: 4, 20, 20>}]} {
    %c0 = arith.constant 0 : index
    %c0_0 = arith.constant 0 : index
    %c0_1 = arith.constant 0 : index
    %0 = vector.load %arg1[%c0, %c0_0, %c0_1] : memref<4x16x16xf32, #tpu.memory_space<vmem>>, vector<4x16x16xf32>
    %c0_2 = arith.constant 0 : index
    %c2 = arith.constant 2 : index
    %c2_3 = arith.constant 2 : index
    %1 = vector.load %arg2[%c0_2, %c2, %c2_3] : memref<4x20x20xf32, #tpu.memory_space<vmem>>, vector<4x16x16xf32>
    tpu.vector_store %arg2[%c0_2, %c2, %c2_3], %0 {strides = array<i32>} : memref<4x20x20xf32, #tpu.memory_space<vmem>>, vector<4x16x16xf32>,
    %2 = vector.extract_strided_slice %0 {offsets = [0, 0, 2], sizes = [4, 16, 1], strides = [1, 1, 1]} : vector<4x16x16xf32> to vector<4x16x1xf32>
    %c0_4 = arith.constant 0 : index
    %c2_5 = arith.constant 2 : index
    %c0_6 = arith.constant 0 : index
    %3 = vector.load %arg2[%c0_4, %c2_5, %c0_6] : memref<4x20x20xf32, #tpu.memory_space<vmem>>, vector<4x16x1xf32>
    tpu.vector_store %arg2[%c0_4, %c2_5, %c0_6], %2 {strides = array<i32>} : memref<4x20x20xf32, #tpu.memory_space<vmem>>, vector<4x16x1xf32>,
    %4 = vector.extract_strided_slice %0 {offsets = [0, 0, 1], sizes = [4, 16, 1], strides = [1, 1, 1]} : vector<4x16x16xf32> to vector<4x16x1xf32>
    %c0_7 = arith.constant 0 : index
    %c2_8 = arith.constant 2 : index
    %c1 = arith.constant 1 : index
    %5 = vector.load %arg2[%c0_7, %c2_8, %c1] : memref<4x20x20xf32, #tpu.memory_space<vmem>>, vector<4x16x1xf32>
    tpu.vector_store %arg2[%c0_7, %c2_8, %c1], %4 {strides = array<i32>} : memref<4x20x20xf32, #tpu.memory_space<vmem>>, vector<4x16x1xf32>,
    %6 = vector.extract_strided_slice %0 {offsets = [0, 0, 14], sizes = [4, 16, 1], strides = [1, 1, 1]} : vector<4x16x16xf32> to vector<4x16x1xf32>
    %c0_9 = arith.constant 0 : index
    %c2_10 = arith.constant 2 : index
    %c18 = arith.constant 18 : index
    %7 = vector.load %arg2[%c0_9, %c2_10, %c18] : memref<4x20x20xf32, #tpu.memory_space<vmem>>, vector<4x16x1xf32>
    tpu.vector_store %arg2[%c0_9, %c2_10, %c18], %6 {strides = array<i32>} : memref<4x20x20xf32, #tpu.memory_space<vmem>>, vector<4x16x1xf32>,
    %8 = vector.extract_strided_slice %0 {offsets = [0, 0, 13], sizes = [4, 16, 1], strides = [1, 1, 1]} : vector<4x16x16xf32> to vector<4x16x1xf32>
    %c0_11 = arith.constant 0 : index
    %c2_12 = arith.constant 2 : index
    %c19 = arith.constant 19 : index
    %9 = vector.load %arg2[%c0_11, %c2_12, %c19] : memref<4x20x20xf32, #tpu.memory_space<vmem>>, vector<4x16x1xf32>
    tpu.vector_store %arg2[%c0_11, %c2_12, %c19], %8 {strides = array<i32>} : memref<4x20x20xf32, #tpu.memory_space<vmem>>, vector<4x16x1xf32>,
    %c0_13 = arith.constant 0 : index
    %c4 = arith.constant 4 : index
    %c0_14 = arith.constant 0 : index
    %10 = vector.load %arg2[%c0_13, %c4, %c0_14] : memref<4x20x20xf32, #tpu.memory_space<vmem>>, vector<4x1x20xf32>
    %c0_15 = arith.constant 0 : index
    %c0_16 = arith.constant 0 : index
    %c0_17 = arith.constant 0 : index
    %11 = vector.load %arg2[%c0_15, %c0_16, %c0_17] : memref<4x20x20xf32, #tpu.memory_space<vmem>>, vector<4x1x20xf32>
    tpu.vector_store %arg2[%c0_15, %c0_16, %c0_17], %10 {strides = array<i32>} : memref<4x20x20xf32, #tpu.memory_space<vmem>>, vector<4x1x20xf32>,
    %c0_18 = arith.constant 0 : index
    %c3 = arith.constant 3 : index
    %c0_19 = arith.constant 0 : index
    %12 = vector.load %arg2[%c0_18, %c3, %c0_19] : memref<4x20x20xf32, #tpu.memory_space<vmem>>, vector<4x1x20xf32>
    %c0_20 = arith.constant 0 : index
    %c1_21 = arith.constant 1 : index
    %c0_22 = arith.constant 0 : index
    %13 = vector.load %arg2[%c0_20, %c1_21, %c0_22] : memref<4x20x20xf32, #tpu.memory_space<vmem>>, vector<4x1x20xf32>
    tpu.vector_store %arg2[%c0_20, %c1_21, %c0_22], %12 {strides = array<i32>} : memref<4x20x20xf32, #tpu.memory_space<vmem>>, vector<4x1x20xf32>,
    %c0_23 = arith.constant 0 : index
    %c16 = arith.constant 16 : index
    %c0_24 = arith.constant 0 : index
    %14 = vector.load %arg2[%c0_23, %c16, %c0_24] : memref<4x20x20xf32, #tpu.memory_space<vmem>>, vector<4x1x20xf32>
    %c0_25 = arith.constant 0 : index
    %c18_26 = arith.constant 18 : index
    %c0_27 = arith.constant 0 : index
    %15 = vector.load %arg2[%c0_25, %c18_26, %c0_27] : memref<4x20x20xf32, #tpu.memory_space<vmem>>, vector<4x1x20xf32>
    tpu.vector_store %arg2[%c0_25, %c18_26, %c0_27], %14 {strides = array<i32>} : memref<4x20x20xf32, #tpu.memory_space<vmem>>, vector<4x1x20xf32>,
    %c0_28 = arith.constant 0 : index
    %c15 = arith.constant 15 : index
    %c0_29 = arith.constant 0 : index
    %16 = vector.load %arg2[%c0_28, %c15, %c0_29] : memref<4x20x20xf32, #tpu.memory_space<vmem>>, vector<4x1x20xf32>
    %c0_30 = arith.constant 0 : index
    %c19_31 = arith.constant 19 : index
    %c0_32 = arith.constant 0 : index
    %17 = vector.load %arg2[%c0_30, %c19_31, %c0_32] : memref<4x20x20xf32, #tpu.memory_space<vmem>>, vector<4x1x20xf32>
    tpu.vector_store %arg2[%c0_30, %c19_31, %c0_32], %16 {strides = array<i32>} : memref<4x20x20xf32, #tpu.memory_space<vmem>>, vector<4x1x20xf32>,
    return
  }
  func.func @transform_0(%arg0: i32) -> (i32, i32, i32) {
    %c0_i32 = arith.constant 0 : i32
    %c0_i32_0 = arith.constant 0 : i32
    %c0_i32_1 = arith.constant 0 : i32
    return %arg0, %c0_i32, %c0_i32_0 : i32, i32, i32
  }
  func.func @transform_1(%arg0: i32) -> (i32, i32, i32) {
    %c0_i32 = arith.constant 0 : i32
    %c0_i32_0 = arith.constant 0 : i32
    %c0_i32_1 = arith.constant 0 : i32
    return %arg0, %c0_i32, %c0_i32_0 : i32, i32, i32
  }
}

</mosaic_0001>

<llo_original>
// kernel: tpu_custom_call.1
$region0: #{tpu_custom_call.1}
  #allocation0 [shape = 'u32[]', space=smem, size = 0x4, offset = 0x4, fixed_abs, tag = 'smem constant byte address 0x4 - core index']
  #allocation1 [shape = 'u32[144,128]{1,0:T(1,128)}', space=vmem, size = 0x12000, scoped, tag = 'internal scratch']
  %s0 = inlined_call_operand.hbm [shape: f32[8,16,16], index: 0, kind: input, shape index: {}]
  %s1 = inlined_call_operand.vmem [shape: f32[8,20,20], index: 1, kind: output, shape index: {}]
  %s2 = sld [smem:[#allocation0]]
  $region41: #{tpu_custom_call.1} parent=0
    _
  %s4 = ssub.s32 1, %s2
  %s5 = scalar_select 0, %s4, %s2
  $region1: #{tpu_custom_call.1} parent=0
    #allocation2 [shape = 'u8[65536]{0}', space=vmem, size = 0x10000, scoped, tag = 'input window, operand 0']
    #allocation3 [shape = 's32[2]{0}', space=sflag, size = 0x8, scoped, tag = 'scoped memory for tpu_custom_call.1']
    %6 = vsyncpa [#allocation3], 0
    %s7 = scalar_lea.sflag [#allocation3], 1
    %8 = vsyncpa %s7, 0
    loop: start=0, step=1, limit=4
    $region2: #{tpu_custom_call.1} parent=1 // loop_pre_header
      _
    $region3: #{tpu_custom_call.1} parent=1 // loop_header
      %s10 = sphi 0, %s14
      %p11 = scmp.ge.s32.totalorder %s10, 4
      %s20 = sphi 0, %s22
      %s23 = sphi 0, %s20
      %s24 = sphi 0, %s23
      %s40 = sphi 0, %s24
      %s46 = sphi 0, %s48
      %s49 = sphi 0, %s46
      %s50 = sphi 0, %s49
      %s66 = sphi 0, %s50
    $region4: #{tpu_custom_call.1} parent=1 // loop_header_branch
      %13 = sbr.rel (%p11) target = $region8
    $region5: #{tpu_custom_call.1} parent=1 // loop_body
      %s15 = ssub.s32 %s10, 1
      %s16 = ssub.s32 %s10, 2
      %s17 = sadd.s32 %s10, 1
      %s18 = ssub.s32 %s10, %s17
      %p19 = scmp.eq.s32.totalorder %s18, 0
      %s21 = sadd.s32 %s20, 1
      %s22 = scalar_select %p19, %s20, %s21
      %p25 = pneg %p19
      %p26 = scmp.eq.s32.totalorder %s10, 1
      %p27 = por %p25, %p26
      %p28 = scmp.ne.s32.totalorder %s20, %s23
      %p29 = scmp.eq.s32.totalorder %s10, 0
      %p30 = por %p28, %p29
      %p31 = scmp.ne.s32.totalorder %s20, %s23
      %p32 = scmp.eq.s32.totalorder %s15, 1
      %p33 = por %p31, %p32
      %p34 = scmp.ne.s32.totalorder %s23, %s24
      %p35 = scmp.eq.s32.totalorder %s15, 0
      %p36 = por %p34, %p35
      %p37 = scmp.ne.s32.totalorder %s23, %s24
      %p38 = scmp.eq.s32.totalorder %s16, 1
      %p39 = por %p37, %p38
      %p41 = scmp.ne.s32.totalorder %s24, %s40
      %p42 = scmp.eq.s32.totalorder %s16, 0
      %p43 = por %p41, %p42
      %s44 = ssub.s32 %s10, %s17
      %p45 = scmp.eq.s32.totalorder %s44, 0
      %s47 = sadd.s32 %s46, 1
      %s48 = scalar_select %p45, %s46, %s47
      %p51 = pneg %p45
      %p52 = scmp.eq.s32.totalorder %s10, 1
      %p53 = por %p51, %p52
      %p54 = scmp.ne.s32.totalorder %s46, %s49
      %p55 = scmp.eq.s32.totalorder %s10, 0
      %p56 = por %p54, %p55
      %p57 = scmp.ne.s32.totalorder %s46, %s49
      %p58 = scmp.eq.s32.totalorder %s15, 1
      %p59 = por %p57, %p58
      %p60 = scmp.ne.s32.totalorder %s49, %s50
      %p61 = scmp.eq.s32.totalorder %s15, 0
      %p62 = por %p60, %p61
      %p63 = scmp.ne.s32.totalorder %s49, %s50
      %p64 = scmp.eq.s32.totalorder %s16, 1
      %p65 = por %p63, %p64
      %p67 = scmp.ne.s32.totalorder %s50, %s66
      %p68 = scmp.eq.s32.totalorder %s16, 0
      %p69 = por %p67, %p68
      %p70 = scmp.le.s32.totalorder 1, %s10
      %p71 = scmp.lt.s32.totalorder %s10, 3
      %p72 = pnand %p70, %p71
      %p73 = pneg %p72
      // Predicated region
      $region9: #{tpu_custom_call.1} parent=5 // pred_check
        _
      $region10: #{tpu_custom_call.1} parent=5 // pred_check_branch
        %75 = sbr.rel (%p72) target = $region12
      $region11: #{tpu_custom_call.1} parent=5 // pred_region
        %s76 = ssub.s32 %s10, 1
      $region12: #{tpu_custom_call.1} parent=5 // pred_fallthru
        _
      %p77 = scmp.lt.s32.totalorder %s10, 2
      // Predicated region
      $region13: #{tpu_custom_call.1} parent=5 // pred_check
        %p78 = pneg %p77
      $region14: #{tpu_custom_call.1} parent=5 // pred_check_branch
        %80 = sbr.rel (%p78) target = $region16
      $region15: #{tpu_custom_call.1} parent=5 // pred_region
        // Predicated region
        $region17: #{tpu_custom_call.1} parent=15 // pred_check
          %p81 = pneg %p30
        $region18: #{tpu_custom_call.1} parent=15 // pred_check_branch
          %83 = sbr.rel (%p81) target = $region20
        $region19: #{tpu_custom_call.1} parent=15 // pred_region
          %s84 = sand.u32 %s20, 1
          %s85 = scalar_lea.sflag [#allocation3], %s84
          %s86 = sand.u32 %s20, 1
          %s87 = smul.addr %s86, 64
          %s88 = scalar_lea.vmem [#allocation2], %s87
          %s89 = smul.u32 4, %s10
          %s91 = ssub.s32 1024, 1024
          %92 = vsyncadd %s85, %s91
          %s93 = smul.addr %s89, 2
          %s94 = smul.addr %s93, 128
          %s95 = scalar_lea.hbm %s0, %s94
          %s96 = sshll.u32 %s88, 4
          %s97 = int_to_ptr.vmem [resolvable:$true] %s96
          %102 = dma.hbm_to_vmem [thread:$0]  %s95, 1024, %s97, %s85, 128, 128, 8
        $region20: #{tpu_custom_call.1} parent=15 // pred_fallthru
          _
      $region16: #{tpu_custom_call.1} parent=5 // pred_fallthru
        _
      %p103 = scmp.le.s32.totalorder 1, %s10
      %p104 = scmp.lt.s32.totalorder %s10, 3
      %p105 = pnand %p103, %p104
      %p106 = pneg %p105
      // Predicated region
      $region21: #{tpu_custom_call.1} parent=5 // pred_check
        _
      $region22: #{tpu_custom_call.1} parent=5 // pred_check_branch
        %108 = sbr.rel (%p105) target = $region24
      $region23: #{tpu_custom_call.1} parent=5 // pred_region
        %s109 = ssub.s32 %s10, 1
        %s110 = sand.u32 %s23, 1
        %s111 = scalar_lea.sflag [#allocation3], %s110
        %s112 = sand.u32 %s23, 1
        %s113 = smul.addr %s112, 64
        %s114 = scalar_lea.vmem [#allocation2], %s113
        // Predicated region
        $region25: #{tpu_custom_call.1} parent=23 // pred_check
          %p115 = pneg %p36
        $region26: #{tpu_custom_call.1} parent=23 // pred_check_branch
          %117 = sbr.rel (%p115) target = $region28
        $region27: #{tpu_custom_call.1} parent=23 // pred_region
          %118 = dma.done %s111, 1024
        $region28: #{tpu_custom_call.1} parent=23 // pred_fallthru
          _
        %s119 = sand.u32 %s23, 1
        %s120 = scalar_lea.sflag [#allocation3], %s119
        %s121 = sand.u32 %s23, 1
        %s122 = smul.addr %s121, 64
        %s123 = scalar_lea.vmem [#allocation2], %s122
        %p124 = pneg %p36
        %p125 = pneg %p33
        %p126 = pneg %p62
        %p127 = pneg %p59
        %s128 = smul.u32 4, %s15
        %p129 = scmp.lt.s32.totalorder %s128, 7
        %s130 = scalar_select %p129, %s128, 7
        %s131 = smul.addr %s130, 3
        %s132 = smul.addr %s131, 8
        %s133 = scalar_lea.vmem %s1, %s132
        %s134 = smul.u32 4, %s15
        %s135 = smul.u32 4, %s15
        %p136 = scmp.lt.s32.totalorder %s135, 7
        %s137 = scalar_select %p136, %s135, 7
        %s138 = smul.addr %s137, 3
        %s139 = smul.addr %s138, 8
        %s140 = scalar_lea.vmem %s1, %s139
        %s141 = smul.u32 4, %s15
        %v142 = vld [vmem:[%s114] sm:$0xff]
        %v143 = vld [vmem:[%s114 + $0x8] sm:$0xff]
        %v144 = vld [vmem:[%s114 + $0x10] sm:$0xff]
        %v145 = vld [vmem:[%s114 + $0x18] sm:$0xff]
        %v146 = vld [vmem:[%s114 + $0x20] sm:$0xff]
        %v147 = vld [vmem:[%s114 + $0x28] sm:$0xff]
        %v148 = vld [vmem:[%s114 + $0x30] sm:$0xff]
        %v149 = vld [vmem:[%s114 + $0x38] sm:$0xff]
        %158 = vrot.lane.b32.xlu0 %v142, 2
        %v159 = vpop.permute.xlu0 %158
        %160 = vrot.lane.b32.xlu0 %v143, 2
        %v161 = vpop.permute.xlu0 %160
        %162 = vrot.lane.b32.xlu0 %v144, 2
        %v163 = vpop.permute.xlu0 %162
        %164 = vrot.lane.b32.xlu0 %v145, 2
        %v165 = vpop.permute.xlu0 %164
        %166 = vrot.lane.b32.xlu0 %v146, 2
        %v167 = vpop.permute.xlu0 %166
        %168 = vrot.lane.b32.xlu0 %v147, 2
        %v169 = vpop.permute.xlu0 %168
        %170 = vrot.lane.b32.xlu0 %v148, 2
        %v171 = vpop.permute.xlu0 %170
        %172 = vrot.lane.b32.xlu0 %v149, 2
        %v173 = vpop.permute.xlu0 %172
        %vm182 = vcmask 146448
        %183 = vst.msk [vmem:[%s140 + $0x2] sm:$0xff] %vm182, %v159
        %184 = vst.msk [vmem:[%s140 + $0xa] sm:$0xff] %vm182, %v161
        %185 = vst.msk [vmem:[%s140 + $0x1a] sm:$0xff] %vm182, %v163
        %186 = vst.msk [vmem:[%s140 + $0x22] sm:$0xff] %vm182, %v165
        %187 = vst.msk [vmem:[%s140 + $0x32] sm:$0xff] %vm182, %v167
        %188 = vst.msk [vmem:[%s140 + $0x3a] sm:$0xff] %vm182, %v169
        %189 = vst.msk [vmem:[%s140 + $0x4a] sm:$0xff] %vm182, %v171
        %190 = vst.msk [vmem:[%s140 + $0x52] sm:$0xff] %vm182, %v173
        %191 = vrot.lane.b32.xlu0 %v142, 126
        %v192 = vpop.permute.xlu0 %191
        %193 = vrot.lane.b32.xlu0 %v143, 126
        %v194 = vpop.permute.xlu0 %193
        %195 = vrot.lane.b32.xlu0 %v144, 126
        %v196 = vpop.permute.xlu0 %195
        %197 = vrot.lane.b32.xlu0 %v145, 126
        %v198 = vpop.permute.xlu0 %197
        %199 = vrot.lane.b32.xlu0 %v146, 126
        %v200 = vpop.permute.xlu0 %199
        %201 = vrot.lane.b32.xlu0 %v147, 126
        %v202 = vpop.permute.xlu0 %201
        %203 = vrot.lane.b32.xlu0 %v148, 126
        %v204 = vpop.permute.xlu0 %203
        %205 = vrot.lane.b32.xlu0 %v149, 126
        %v206 = vpop.permute.xlu0 %205
        %vm215 = vcmask 7168
        %216 = vst.msk [vmem:[%s140 + $0x2] sm:$0xff] %vm215, %v192
        %217 = vst.msk [vmem:[%s140 + $0xa] sm:$0xff] %vm215, %v194
        %218 = vst.msk [vmem:[%s140 + $0x1a] sm:$0xff] %vm215, %v196
        %219 = vst.msk [vmem:[%s140 + $0x22] sm:$0xff] %vm215, %v198
        %220 = vst.msk [vmem:[%s140 + $0x32] sm:$0xff] %vm215, %v200
        %221 = vst.msk [vmem:[%s140 + $0x3a] sm:$0xff] %vm215, %v202
        %222 = vst.msk [vmem:[%s140 + $0x4a] sm:$0xff] %vm215, %v204
        %223 = vst.msk [vmem:[%s140 + $0x52] sm:$0xff] %vm215, %v206
        %vm224 = vcmask 15368
        %225 = vst.msk [vmem:[%s140 + $0x2] sm:$0xff] %vm224, %v142
        %226 = vst.msk [vmem:[%s140 + $0xa] sm:$0xff] %vm224, %v143
        %227 = vst.msk [vmem:[%s140 + $0x1a] sm:$0xff] %vm224, %v144
        %228 = vst.msk [vmem:[%s140 + $0x22] sm:$0xff] %vm224, %v145
        %229 = vst.msk [vmem:[%s140 + $0x32] sm:$0xff] %vm224, %v146
        %230 = vst.msk [vmem:[%s140 + $0x3a] sm:$0xff] %vm224, %v147
        %231 = vst.msk [vmem:[%s140 + $0x4a] sm:$0xff] %vm224, %v148
        %232 = vst.msk [vmem:[%s140 + $0x52] sm:$0xff] %vm224, %v149
        %233 = vrot.lane.b32.xlu0 %v142, 4
        %v234 = vpop.permute.xlu0 %233
        %235 = vrot.lane.b32.xlu0 %v143, 4
        %v236 = vpop.permute.xlu0 %235
        %237 = vrot.lane.b32.xlu0 %v144, 4
        %v238 = vpop.permute.xlu0 %237
        %239 = vrot.lane.b32.xlu0 %v145, 4
        %v240 = vpop.permute.xlu0 %239
        %241 = vrot.lane.b32.xlu0 %v146, 4
        %v242 = vpop.permute.xlu0 %241
        %243 = vrot.lane.b32.xlu0 %v147, 4
        %v244 = vpop.permute.xlu0 %243
        %245 = vrot.lane.b32.xlu0 %v148, 4
        %v246 = vpop.permute.xlu0 %245
        %247 = vrot.lane.b32.xlu0 %v149, 4
        %v248 = vpop.permute.xlu0 %247
        %vm257 = vcmask 154768
        %258 = vst.msk [vmem:[%s140 + $0x2] sm:$0xff] %vm257, %v234
        %259 = vst.msk [vmem:[%s140 + $0xa] sm:$0xff] %vm257, %v236
        %260 = vst.msk [vmem:[%s140 + $0x1a] sm:$0xff] %vm257, %v238
        %261 = vst.msk [vmem:[%s140 + $0x22] sm:$0xff] %vm257, %v240
        %262 = vst.msk [vmem:[%s140 + $0x32] sm:$0xff] %vm257, %v242
        %263 = vst.msk [vmem:[%s140 + $0x3a] sm:$0xff] %vm257, %v244
        %264 = vst.msk [vmem:[%s140 + $0x4a] sm:$0xff] %vm257, %v246
        %265 = vst.msk [vmem:[%s140 + $0x52] sm:$0xff] %vm257, %v248
        %266 = vrot.lane.b32.xlu0 %v142, 6
        %v267 = vpop.permute.xlu0 %266
        %268 = vrot.lane.b32.xlu0 %v143, 6
        %v269 = vpop.permute.xlu0 %268
        %270 = vrot.lane.b32.xlu0 %v144, 6
        %v271 = vpop.permute.xlu0 %270
        %272 = vrot.lane.b32.xlu0 %v145, 6
        %v273 = vpop.permute.xlu0 %272
        %274 = vrot.lane.b32.xlu0 %v146, 6
        %v275 = vpop.permute.xlu0 %274
        %276 = vrot.lane.b32.xlu0 %v147, 6
        %v277 = vpop.permute.xlu0 %276
        %278 = vrot.lane.b32.xlu0 %v148, 6
        %v279 = vpop.permute.xlu0 %278
        %280 = vrot.lane.b32.xlu0 %v149, 6
        %v281 = vpop.permute.xlu0 %280
        %vm290 = vcmask 162968
        %291 = vst.msk [vmem:[%s140 + $0x2] sm:$0xff] %vm290, %v267
        %292 = vst.msk [vmem:[%s140 + $0xa] sm:$0xff] %vm290, %v269
        %293 = vst.msk [vmem:[%s140 + $0x1a] sm:$0xff] %vm290, %v271
        %294 = vst.msk [vmem:[%s140 + $0x22] sm:$0xff] %vm290, %v273
        %295 = vst.msk [vmem:[%s140 + $0x32] sm:$0xff] %vm290, %v275
        %296 = vst.msk [vmem:[%s140 + $0x3a] sm:$0xff] %vm290, %v277
        %297 = vst.msk [vmem:[%s140 + $0x4a] sm:$0xff] %vm290, %v279
        %298 = vst.msk [vmem:[%s140 + $0x52] sm:$0xff] %vm290, %v281
        %v299 = vld [vmem:[%s140 + $0x4] sm:$0x1]
        %v300 = vld [vmem:[%s140 + $0x1c] sm:$0x1]
        %v301 = vld [vmem:[%s140 + $0x34] sm:$0x1]
        %v302 = vld [vmem:[%s140 + $0x4c] sm:$0x1]
        %vm303 = vcmask 155648
        %304 = vst.msk [vmem:[%s140] sm:$0x1] %vm303, %v299
        %305 = vst.msk [vmem:[%s140 + $0x18] sm:$0x1] %vm303, %v300
        %306 = vst.msk [vmem:[%s140 + $0x30] sm:$0x1] %vm303, %v301
        %307 = vst.msk [vmem:[%s140 + $0x48] sm:$0x1] %vm303, %v302
        %v308 = vld [vmem:[%s140 + $0x3] sm:$0x1]
        %v309 = vld [vmem:[%s140 + $0x1b] sm:$0x1]
        %v310 = vld [vmem:[%s140 + $0x33] sm:$0x1]
        %v311 = vld [vmem:[%s140 + $0x4b] sm:$0x1]
        %312 = vst.msk [vmem:[%s140 + $0x1] sm:$0x1] %vm303, %v308
        %313 = vst.msk [vmem:[%s140 + $0x19] sm:$0x1] %vm303, %v309
        %314 = vst.msk [vmem:[%s140 + $0x31] sm:$0x1] %vm303, %v310
        %315 = vst.msk [vmem:[%s140 + $0x49] sm:$0x1] %vm303, %v311
        %v316 = vld [vmem:[%s140 + $0x10] sm:$0x1]
        %v317 = vld [vmem:[%s140 + $0x28] sm:$0x1]
        %v318 = vld [vmem:[%s140 + $0x40] sm:$0x1]
        %v319 = vld [vmem:[%s140 + $0x58] sm:$0x1]
        %320 = vst.msk [vmem:[%s140 + $0x12] sm:$0x1] %vm303, %v316
        %321 = vst.msk [vmem:[%s140 + $0x2a] sm:$0x1] %vm303, %v317
        %322 = vst.msk [vmem:[%s140 + $0x42] sm:$0x1] %vm303, %v318
        %323 = vst.msk [vmem:[%s140 + $0x5a] sm:$0x1] %vm303, %v319
        %v324 = vld [vmem:[%s140 + $0xf] sm:$0x1]
        %v325 = vld [vmem:[%s140 + $0x27] sm:$0x1]
        %v326 = vld [vmem:[%s140 + $0x3f] sm:$0x1]
        %v327 = vld [vmem:[%s140 + $0x57] sm:$0x1]
        %328 = vst.msk [vmem:[%s140 + $0x13] sm:$0x1] %vm303, %v324
        %329 = vst.msk [vmem:[%s140 + $0x2b] sm:$0x1] %vm303, %v325
        %330 = vst.msk [vmem:[%s140 + $0x43] sm:$0x1] %vm303, %v326
        %331 = vst.msk [vmem:[%s140 + $0x5b] sm:$0x1] %vm303, %v327
        %s332 = smul.u32 4, %s15
        %p333 = scmp.lt.s32.totalorder %s332, 7
        %s334 = scalar_select %p333, %s332, 7
        %s335 = smul.addr %s334, 3
        %s336 = smul.addr %s335, 8
        %s337 = scalar_lea.vmem %s1, %s336
        // Predicated region
        $region29: #{tpu_custom_call.1} parent=23 // pred_check
          %p338 = pneg %p59
        $region30: #{tpu_custom_call.1} parent=23 // pred_check_branch
          %340 = sbr.rel (%p338) target = $region32
        $region31: #{tpu_custom_call.1} parent=23 // pred_region
          %s341 = smul.u32 4, %s15
        $region32: #{tpu_custom_call.1} parent=23 // pred_fallthru
          _
      $region24: #{tpu_custom_call.1} parent=5 // pred_fallthru
        _
      %p342 = scmp.le.s32.totalorder 2, %s10
      // Predicated region
      $region33: #{tpu_custom_call.1} parent=5 // pred_check
        %p343 = pneg %p342
      $region34: #{tpu_custom_call.1} parent=5 // pred_check_branch
        %345 = sbr.rel (%p343) target = $region36
      $region35: #{tpu_custom_call.1} parent=5 // pred_region
        %s346 = ssub.s32 %s10, 2
        // Predicated region
        $region37: #{tpu_custom_call.1} parent=35 // pred_check
          %p347 = pneg %p65
        $region38: #{tpu_custom_call.1} parent=35 // pred_check_branch
          %349 = sbr.rel (%p347) target = $region40
        $region39: #{tpu_custom_call.1} parent=35 // pred_region
          %s350 = smul.u32 4, %s16
          %p351 = scmp.lt.s32.totalorder %s350, 7
          %s352 = scalar_select %p351, %s350, 7
          %s353 = smul.addr %s352, 3
          %s354 = smul.addr %s353, 8
          %s355 = scalar_lea.vmem %s1, %s354
        $region40: #{tpu_custom_call.1} parent=35 // pred_fallthru
          _
      $region36: #{tpu_custom_call.1} parent=5 // pred_fallthru
        _
    $region6: #{tpu_custom_call.1} parent=1 // loop_footer
      %s14 = sadd.s32 1, %s10
    $region7: #{tpu_custom_call.1} parent=1 // loop_footer_branch
      %9 = sbr.rel target = $region3
    $region8: #{tpu_custom_call.1} parent=1 // loop_exit
      _
    %356 = vsyncpa [#allocation3], 1
    %s357 = scalar_lea.sflag [#allocation3], 1
    %358 = vsyncpa %s357, 1

</llo_original>
